<compile_context>
chip_gen: v7x
topology: tpu7x:2x2x1
jax: 0.10.0
libtpu: 0.0.40
codegen_flags: <defaults>
</compile_context>

<pallas_src>
import math
from functools import partial

import jax
import jax.numpy as jnp
from jax.experimental import pallas as pl
from jax.experimental.pallas import tpu as pltpu


def _default_vmem_limit():
    # 128 MiB on v5e/v6e, 64 MiB per TensorCore on v7x; leave headroom for the
    # compiler's internal scratch and the pipeline's double buffers.
    try:
        cap = pltpu.get_tpu_info().vmem_capacity_bytes
    except Exception:
        cap = 128 * 1024 * 1024
    return int(min(cap * 3 // 4, 96 * 1024 * 1024))


_VMEM_LIMIT = _default_vmem_limit()


def _pick_tile(dim, target, multiple):
    """Largest tile <= target that is a multiple of `multiple` and divides `dim`,
    else the full dimension.  (For v7x, pick targets <= dim/2 on 'parallel' axes so
    both TensorCores get work.)"""
    if dim <= target:
        return dim
    t = (target // multiple) * multiple
    while t >= multiple:
        if dim % t == 0:
            return t
        t -= multiple
    return dim


# ----------------------------------------------------------------------------
# Tiled linear (matmul + bias + optional GELU + optional fused residual adds)
# ----------------------------------------------------------------------------
def _linear_kernel(*args, activation, has_bias, n_res):
    n_in = 2 + (1 if has_bias else 0) + n_res
    x_ref, w_ref = args[0], args[1]
    pos = 2
    b_ref = None
    if has_bias:
        b_ref = args[pos]
        pos += 1
    res_refs = args[pos:pos + n_res]
    o_ref = args[n_in]
    acc_ref = args[n_in + 1]

    k_idx = pl.program_id(2)

    @pl.when(k_idx == 0)
    def _():
        acc_ref[...] = jnp.zeros_like(acc_ref)

    # bf16 x bf16 on the MXU, f32 accumulation.
    acc_ref[...] += jnp.dot(x_ref[...], w_ref[...],
                            preferred_element_type=jnp.float32)

    @pl.when(k_idx == pl.num_programs(2) - 1)
    def _():
        acc = acc_ref[...]
        if has_bias:
            acc = acc + b_ref[...].astype(jnp.float32)
        if activation == "gelu_tanh":
            c = math.sqrt(2.0 / math.pi)
            acc = 0.5 * acc * (1.0 + jnp.tanh(c * (acc + 0.044715 * acc * acc * acc)))
        for r in res_refs:
            acc = acc + r[...].astype(jnp.float32)
        o_ref[...] = acc.astype(o_ref.dtype)


def linear(x, w, b=None, activation=None, residuals=(), out_dtype=None,
           tm_target=512, tn_target=512, tk_target=1024):
    """x: [T, K], w: [K, N], b: [N] or None.  Residuals are [T, N] arrays added in the
    matmul epilogue.  Tiled over (T, N, K) with an f32 VMEM accumulator; large tiles keep
    the matmul MXU-bound (512x512x1024 bf16 working set is ~5 MiB double-buffered)."""
    T, K = x.shape
    N = w.shape[1]
    out_dtype = out_dtype or x.dtype
    tm = _pick_tile(T, tm_target, 16)     # bf16 packs 2 rows/sublane -> multiples of 16
    tn = _pick_tile(N, tn_target, 128)
    tk = _pick_tile(K, tk_target, 128)
    grid = (T // tm, N // tn, K // tk)

    in_specs = [pl.BlockSpec((tm, tk), lambda i, j, k: (i, k)),
                pl.BlockSpec((tk, tn), lambda i, j, k: (k, j))]
    inputs = [x, w]
    if b is not None:
        in_specs.append(pl.BlockSpec((1, tn), lambda i, j, k: (0, j)))
        inputs.append(b.reshape(1, N))
    for r in residuals:
        in_specs.append(pl.BlockSpec((tm, tn), lambda i, j, k: (i, j)))
        inputs.append(r)

    return pl.pallas_call(
        partial(_linear_kernel, activation=activation,
                has_bias=b is not None, n_res=len(residuals)),
        grid=grid,
        in_specs=in_specs,
        out_specs=pl.BlockSpec((tm, tn), lambda i, j, k: (i, j)),
        out_shape=jax.ShapeDtypeStruct((T, N), out_dtype),
        scratch_shapes=[pltpu.VMEM((tm, tn), jnp.float32)],
        compiler_params=pltpu.CompilerParams(
            dimension_semantics=("parallel", "parallel", "arbitrary"),
            vmem_limit_bytes=_VMEM_LIMIT),
    )(*inputs)


# ----------------------------------------------------------------------------
# Fused LayerNorm + linear (+ optional GELU).
# LN is computed once per row tile (at j == 0) into a VMEM scratch and reused for
# every output tile j > 0 -> removes the standalone LN pass, its HBM round trip, and
# the redundant per-N-tile recompute.
# ----------------------------------------------------------------------------
def _ln_linear_kernel(x_ref, g_ref, bln_ref, w_ref, *rest, eps, activation, has_bias):
    if has_bias:
        b_ref, o_ref, y_sc = rest
    else:
        b_ref = None
        o_ref, y_sc = rest

    @pl.when(pl.program_id(1) == 0)
    def _():
        x = x_ref[...].astype(jnp.float32)
        mu = jnp.mean(x, axis=-1, keepdims=True)
        var = jnp.mean(jnp.square(x - mu), axis=-1, keepdims=True)
        y = (x - mu) * jax.lax.rsqrt(var + eps)
        y = y * g_ref[...].astype(jnp.float32) + bln_ref[...].astype(jnp.float32)
        y_sc[...] = y.astype(y_sc.dtype)

    acc = jnp.dot(y_sc[...], w_ref[...], preferred_element_type=jnp.float32)
    if has_bias:
        acc = acc + b_ref[...].astype(jnp.float32)
    if activation == "gelu_tanh":
        c = math.sqrt(2.0 / math.pi)
        acc = 0.5 * acc * (1.0 + jnp.tanh(c * (acc + 0.044715 * acc * acc * acc)))
    o_ref[...] = acc.astype(o_ref.dtype)


def ln_linear(x, gamma, beta, w, b, eps, activation=None, out_dtype=None,
              tm_target=512, tn_target=512):
    """LayerNorm(x) @ w + b.  x: [T, E], w: [E, N].  Full-E blocks (LN needs the row);
    the output-tile axis j is innermost and 'arbitrary' so the cached LN is valid."""
    T, E = x.shape
    N = w.shape[1]
    out_dtype = out_dtype or x.dtype
    tm = _pick_tile(T, tm_target, 16)
    tn = _pick_tile(N, tn_target, 128)
    grid = (T // tm, N // tn)

    in_specs = [pl.BlockSpec((tm, E), lambda i, j: (i, 0)),
                pl.BlockSpec((1, E), lambda i, j: (0, 0)),
                pl.BlockSpec((1, E), lambda i, j: (0, 0)),
                pl.BlockSpec((E, tn), lambda i, j: (0, j))]
    inputs = [x, gamma.reshape(1, E), beta.reshape(1, E), w]
    if b is not None:
        in_specs.append(pl.BlockSpec((1, tn), lambda i, j: (0, j)))
        inputs.append(b.reshape(1, N))

    return pl.pallas_call(
        partial(_ln_linear_kernel, eps=eps, activation=activation,
                has_bias=b is not None),
        grid=grid,
        in_specs=in_specs,
        out_specs=pl.BlockSpec((tm, tn), lambda i, j: (i, j)),
        out_shape=jax.ShapeDtypeStruct((T, N), out_dtype),
        scratch_shapes=[pltpu.VMEM((tm, E), x.dtype)],     # cached LN(x) row tile
        compiler_params=pltpu.CompilerParams(
            dimension_semantics=("parallel", "arbitrary"),
            vmem_limit_bytes=_VMEM_LIMIT),
    )(*inputs)


# ----------------------------------------------------------------------------
# Flash-style causal attention.
#   * Q/K/V in token-major lane-dense [T, H*D] / [T, Hkv*D] (no HBM transposes).
#   * kv axis last ("arbitrary"); fully-masked kv blocks are neither fetched
#     (clamped index_map -> duplicate block index -> DMA skipped) nor computed.
#   * Q is pre-scaled by softmax_scale (folded into rotary).
#   * GQA handled in-kernel (kv head = q head // group).
#   * Output written lane-dense as (tq, H*D) in one store.
# ----------------------------------------------------------------------------
def _flash_attn_kernel(q_ref, k_ref, v_ref, o_ref, m_sc, l_sc, acc_sc, *,
                       num_heads, num_kv_heads, head_dim, tq, tk):
    H, Hkv, D = num_heads, num_kv_heads, head_dim
    grp = H // Hkv
    qi = pl.program_id(0)
    ki = pl.program_id(1)
    nk = pl.num_programs(1)

    @pl.when(ki == 0)
    def _():
        m_sc[...] = jnp.full_like(m_sc, -jnp.inf)
        l_sc[...] = jnp.zeros_like(l_sc)
        acc_sc[...] = jnp.zeros_like(acc_sc)

    q_start = qi * tq
    k_start = ki * tk
    needed = k_start <= q_start + (tq - 1)          # kv block intersects the causal band
    diag = (k_start + (tk - 1)) > q_start           # block straddles the diagonal

    def compute(apply_mask):
        if apply_mask:
            row = q_start + jax.lax.broadcasted_iota(jnp.int32, (tq, tk), 0)
            col = k_start + jax.lax.broadcasted_iota(jnp.int32, (tq, tk), 1)
            causal = row >= col
        for h in range(H):
            hk = h // grp
            q_h = q_ref[:, h * D:(h + 1) * D]                       # (tq, D), pre-scaled
            k_h = k_ref[:, hk * D:(hk + 1) * D]                     # (tk, D)
            v_h = v_ref[:, hk * D:(hk + 1) * D]                     # (tk, D)
            # Q . K^T : contract the last dim of both operands (MXU-friendly NT form).
            s = jax.lax.dot_general(q_h, k_h, (((1,), (1,)), ((), ())),
                                    preferred_element_type=jnp.float32)   # (tq, tk)
            if apply_mask:
                s = jnp.where(causal, s, -1e30)
            m_prev = m_sc[:, h:h + 1]                                # (tq, 1)
            m_new = jnp.maximum(m_prev, jnp.max(s, axis=-1, keepdims=True))
            alpha = jnp.exp(m_prev - m_new)
            p = jnp.exp(s - m_new)
            l_sc[:, h:h + 1] = alpha * l_sc[:, h:h + 1] + jnp.sum(p, axis=-1,
                                                                  keepdims=True)
            acc_sc[:, h * D:(h + 1) * D] = (
                alpha * acc_sc[:, h * D:(h + 1) * D]
                + jnp.dot(p.astype(v_h.dtype), v_h,
                          preferred_element_type=jnp.float32))
            m_sc[:, h:h + 1] = m_new

    @pl.when(jnp.logical_and(needed, diag))
    def _():
        compute(True)

    @pl.when(jnp.logical_and(needed, jnp.logical_not(diag)))
    def _():
        compute(False)

    @pl.when(ki == nk - 1)
    def _():
        for h in range(H):
            inv_l = pl.reciprocal(l_sc[:, h:h + 1], approx=True)     # (tq, 1)
            acc_sc[:, h * D:(h + 1) * D] = acc_sc[:, h * D:(h + 1) * D] * inv_l
        o_ref[...] = acc_sc[...].astype(o_ref.dtype)                  # one lane-dense store


def flash_attention(q, k, v, num_heads, num_kv_heads, head_dim,
                    tq_target=256, tk_target=256):
    """q: [T, H*D] (pre-scaled), k/v: [T, Hkv*D].  Returns lane-dense [T, H*D].
    v5e: prefer tk_target=128 (4x128 MXU); v6e/v7x: 256."""
    T = q.shape[0]
    HD = num_heads * head_dim
    KVD = num_kv_heads * head_dim
    tq = _pick_tile(T, tq_target, 16)
    tk = _pick_tile(T, tk_target, 16)
    grid = (T // tq, T // tk)         # kv axis last ("arbitrary")

    def kv_map(qi, ki):
        # Clamp to the last causally-needed kv block for this query tile; the repeated
        # block index makes Pallas skip the DMA for fully-masked blocks.
        return (jnp.minimum(ki, (qi * tq + tq - 1) // tk), 0)

    return pl.pallas_call(
        partial(_flash_attn_kernel, num_heads=num_heads, num_kv_heads=num_kv_heads,
                head_dim=head_dim, tq=tq, tk=tk),
        grid=grid,
        in_specs=[pl.BlockSpec((tq, HD), lambda qi, ki: (qi, 0)),
                  pl.BlockSpec((tk, KVD), kv_map),
                  pl.BlockSpec((tk, KVD), kv_map)],
        out_specs=pl.BlockSpec((tq, HD), lambda qi, ki: (qi, 0)),
        out_shape=jax.ShapeDtypeStruct((T, HD), q.dtype),
        scratch_shapes=[pltpu.VMEM((tq, num_heads), jnp.float32),   # running max m
                        pltpu.VMEM((tq, num_heads), jnp.float32),   # running sum l
                        pltpu.VMEM((tq, HD), jnp.float32)],         # accumulator
        compiler_params=pltpu.CompilerParams(
            dimension_semantics=("parallel", "arbitrary"),
            vmem_limit_bytes=_VMEM_LIMIT),
    )(q, k, v)


# ----------------------------------------------------------------------------
# Plain-JAX glue: rotary embedding, config, parameter construction
# ----------------------------------------------------------------------------
def get_cos_sin(position_ids, rotary_dim, base=10000.0):
    inv_freq = 1.0 / (base ** (jnp.arange(0, rotary_dim, 2, dtype=jnp.float32) / rotary_dim))
    freqs = position_ids.astype(jnp.float32)[:, None] * inv_freq[None, :]   # (T, rd/2)
    return jnp.cos(freqs), jnp.sin(freqs)


def apply_partial_rotary(x, cos, sin, rotary_dim, scale=1.0):
    """x: [T, H, D]; NeoX-style rotary on the first rotary_dim features (f32 math).
    `scale` folds the attention softmax scale into Q for free."""
    dtype = x.dtype
    xf = x.astype(jnp.float32)
    half = rotary_dim // 2
    x1 = xf[..., :half]
    x2 = xf[..., half:rotary_dim]
    rest = xf[..., rotary_dim:]
    c = cos[:, None, :]
    s = sin[:, None, :]
    r1 = x1 * c - x2 * s
    r2 = x2 * c + x1 * s
    out = jnp.concatenate([r1, r2, rest], axis=-1)
    if scale != 1.0:
        out = out * scale
    return out.astype(dtype)


class PhiConfig:
    vocab_size = 128
    n_embd = 64
    n_head = 4
    n_head_kv = 4          # Phi default: n_head_kv == n_head
    n_layer = 2
    n_inner = 256          # 4 * n_embd
    rotary_dim = 8         # partial rotary (as in Phi)
    layer_norm_epsilon = 1e-5
    rope_theta = 10000.0
    activation_function = "gelu_pytorch_tanh"   # -> tanh-approximate GELU


def init_params(cfg, key, dtype=jnp.bfloat16):
    """Deterministic synthetic weights.  Matmul weights stored [in, out] in bf16."""
    def nrm(key, shape, scale=0.02, out_dtype=dtype):
        return (jax.random.normal(key, shape, dtype=jnp.float32) * scale).astype(out_dtype)

    keys = iter(jax.random.split(key, 8 + cfg.n_layer * 12))
    E, H, Hkv = cfg.n_embd, cfg.n_head, cfg.n_head_kv
    D = E // H
    qkv_out = D * (H + 2 * Hkv)

    params = {"wte": nrm(next(keys), (cfg.vocab_size, E)), "layers": []}
    for _ in range(cfg.n_layer):
        lp = {
            # LayerNorm params kept in f32 (tiny; cast inside the kernel)
            "ln_g": jnp.ones((E,), jnp.float32) + nrm(next(keys), (E,), out_dtype=jnp.float32),
            "ln_b": nrm(next(keys), (E,), out_dtype=jnp.float32),
            "wqkv_w": nrm(next(keys), (E, qkv_out)),
            "wqkv_b": nrm(next(keys), (qkv_out,)),
            "out_proj_w": nrm(next(keys), (H * D, E)),
            "out_proj_b": nrm(next(keys), (E,)),
            "fc1_w": nrm(next(keys), (E, cfg.n_inner)),
            "fc1_b": nrm(next(keys), (cfg.n_inner,)),
            "fc2_w": nrm(next(keys), (cfg.n_inner, E)),
            "fc2_b": nrm(next(keys), (E,)),
        }
        params["layers"].append(lp)
    params["lm_ln_g"] = jnp.ones((E,), jnp.float32) + nrm(next(keys), (E,), out_dtype=jnp.float32)
    params["lm_ln_b"] = nrm(next(keys), (E,), out_dtype=jnp.float32)
    params["lm_head_w"] = nrm(next(keys), (E, cfg.vocab_size))   # TensorParallelHead: no bias
    return params


# ----------------------------------------------------------------------------
# Forward pass (mirrors FlashPhiForCausalLM.forward for the prefill path)
# ----------------------------------------------------------------------------
def flash_phi_forward(params, cfg, input_ids, position_ids, kv_cache, slots,
                      lm_head_indices=None):
    E, H, Hkv = cfg.n_embd, cfg.n_head, cfg.n_head_kv
    D = E // H
    softmax_scale = D ** -0.5
    T = input_ids.shape[0]

    # transformer.embd
    hidden_states = params["wte"][input_ids]                        # (T, E) bf16
    cos, sin = get_cos_sin(position_ids, cfg.rotary_dim, cfg.rope_theta)

    new_kv_cache = []
    for li, lp in enumerate(params["layers"]):
        # --- FlashPhiAttention (shared LN fused into the QKV projection) ---
        qkv = ln_linear(hidden_states, lp["ln_g"], lp["ln_b"],
                        lp["wqkv_w"], lp["wqkv_b"], cfg.layer_norm_epsilon)
        q = qkv[:, : H * D].reshape(T, H, D)
        k = qkv[:, H * D: H * D + Hkv * D].reshape(T, Hkv, D)
        v = qkv[:, H * D + Hkv * D:].reshape(T, Hkv, D)

        # softmax scale folded into Q (k/v are cached unscaled, matching the reference)
        q = apply_partial_rotary(q, cos, sin, cfg.rotary_dim, scale=softmax_scale)
        k = apply_partial_rotary(k, cos, sin, cfg.rotary_dim)

        # paged_attn.reshape_and_cache equivalent: write K/V into the cache at `slots`
        k_cache, v_cache = kv_cache[li]
        k_cache = k_cache.at[slots].set(k.astype(k_cache.dtype))
        v_cache = v_cache.at[slots].set(v.astype(v_cache.dtype))
        new_kv_cache.append((k_cache, v_cache))

        # flash_attn.attention (prefill, causal); token-major [T, H*D] views are free
        attn = flash_attention(q.reshape(T, H * D), k.reshape(T, Hkv * D),
                               v.reshape(T, Hkv * D), H, Hkv, D)     # (T, H*D) lane-dense
        attn_output = linear(attn, lp["out_proj_w"], lp["out_proj_b"])

        # --- PhiMLP (shared LN fused into fc1, GELU fused into its epilogue) ---
        m = ln_linear(hidden_states, lp["ln_g"], lp["ln_b"],
                      lp["fc1_w"], lp["fc1_b"], cfg.layer_norm_epsilon,
                      activation="gelu_tanh")
        # fc2 with the residual adds (mlp + attn + hidden) fused into the epilogue
        hidden_states = linear(m, lp["fc2_w"], lp["fc2_b"],
                               residuals=(attn_output, hidden_states))

    # PhiCausalLMHead (LN fused into the lm_head matmul; lm_head has no bias)
    if lm_head_indices is not None:
        hidden_states = hidden_states[lm_head_indices]
    logits = ln_linear(hidden_states, params["lm_ln_g"], params["lm_ln_b"],
                       params["lm_head_w"], None, cfg.layer_norm_epsilon,
                       out_dtype=jnp.float32)
    return logits, new_kv_cache


# ----------------------------------------------------------------------------
# Pure-JAX reference (same bf16 rounding points) for a sanity check
# ----------------------------------------------------------------------------
def _layernorm_ref(x, g, b, eps):
    xf = x.astype(jnp.float32)
    mu = xf.mean(-1, keepdims=True)
    var = jnp.square(xf - mu).mean(-1, keepdims=True)
    return ((xf - mu) * jax.lax.rsqrt(var + eps) * g + b).astype(x.dtype)


def reference_forward(params, cfg, input_ids, position_ids, lm_head_indices):
    E, H, Hkv = cfg.n_embd, cfg.n_head, cfg.n_head_kv
    D = E // H
    scale = D ** -0.5
    T = input_ids.shape[0]
    h = params["wte"][input_ids]
    cos, sin = get_cos_sin(position_ids, cfg.rotary_dim, cfg.rope_theta)
    c_gelu = math.sqrt(2.0 / math.pi)
    for lp in params["layers"]:
        n = _layernorm_ref(h, lp["ln_g"], lp["ln_b"], cfg.layer_norm_epsilon)
        qkv = (jnp.dot(n, lp["wqkv_w"], preferred_element_type=jnp.float32)
               + lp["wqkv_b"].astype(jnp.float32)).astype(h.dtype)
        q = qkv[:, :H * D].reshape(T, H, D)
        k = qkv[:, H * D:H * D + Hkv * D].reshape(T, Hkv, D)
        v = qkv[:, H * D + Hkv * D:].reshape(T, Hkv, D)
        q = apply_partial_rotary(q, cos, sin, cfg.rotary_dim)
        k = apply_partial_rotary(k, cos, sin, cfg.rotary_dim)
        if Hkv != H:
            k = jnp.repeat(k, H // Hkv, axis=1)
            v = jnp.repeat(v, H // Hkv, axis=1)
        s = jnp.einsum("qhd,khd->hqk", q.astype(jnp.float32), k.astype(jnp.float32)) * scale
        mask = jnp.tril(jnp.ones((T, T), bool))
        s = jnp.where(mask[None], s, -jnp.inf)
        p = jax.nn.softmax(s, axis=-1)
        o = jnp.einsum("hqk,khd->qhd", p, v.astype(jnp.float32)).reshape(T, H * D)
        o = o.astype(h.dtype)
        attn_out = (jnp.dot(o, lp["out_proj_w"], preferred_element_type=jnp.float32)
                    + lp["out_proj_b"].astype(jnp.float32)).astype(h.dtype)
        m = (jnp.dot(n, lp["fc1_w"], preferred_element_type=jnp.float32)
             + lp["fc1_b"].astype(jnp.float32))
        m = 0.5 * m * (1.0 + jnp.tanh(c_gelu * (m + 0.044715 * m * m * m)))
        m = m.astype(h.dtype)
        mlp_f32 = (jnp.dot(m, lp["fc2_w"], preferred_element_type=jnp.float32)
                   + lp["fc2_b"].astype(jnp.float32))
        h = (mlp_f32 + attn_out.astype(jnp.float32) + h.astype(jnp.float32)).astype(h.dtype)
    if lm_head_indices is not None:
        h = h[lm_head_indices]
    n = _layernorm_ref(h, params["lm_ln_g"], params["lm_ln_b"], cfg.layer_norm_epsilon)
    return jnp.dot(n, params["lm_head_w"], preferred_element_type=jnp.float32)


# ----------------------------------------------------------------------------
if __name__ == "__main__":
    cfg = PhiConfig()
    root = jax.random.PRNGKey(0)
    k_params, k_ids = jax.random.split(root)
    params = init_params(cfg, k_params)

    T = 8                                   # flattened prefill tokens (single sequence)
    input_ids = jax.random.randint(k_ids, (T,), 0, cfg.vocab_size)
    position_ids = jnp.arange(T, dtype=jnp.int32)
    slots = jnp.arange(T, dtype=jnp.int32)

    num_slots = 16
    D = cfg.n_embd // cfg.n_head
    kv_cache = [
        (jnp.zeros((num_slots, cfg.n_head_kv, D), jnp.bfloat16),
         jnp.zeros((num_slots, cfg.n_head_kv, D), jnp.bfloat16))
        for _ in range(cfg.n_layer)
    ]
    lm_head_indices = jnp.array([T - 1], dtype=jnp.int32)   # last-token logits

    logits, new_kv_cache = flash_phi_forward(
        params, cfg, input_ids, position_ids, kv_cache, slots, lm_head_indices)
    logits = jax.block_until_ready(logits)
    assert logits.shape == (1, cfg.vocab_size)
    assert bool(jnp.all(jnp.isfinite(logits)))

    # loose correctness check against a pure-JAX reference (bf16 + approx reciprocal)
    ref = jax.block_until_ready(
        reference_forward(params, cfg, input_ids, position_ids, lm_head_indices))
    max_err = float(jnp.max(jnp.abs(logits - ref)))
    assert max_err < 3e-2, f"max abs error vs reference: {max_err}"

    print("KERNEL_OK")
</pallas_src>

<mosaic_0001>
module attributes {stable_mosaic.version = 11 : i64} {
  func.func @_ln_linear_kernel(%arg0: i32, %arg1: i32, %arg2: memref<8x64xbf16, #tpu.memory_space<vmem>>, %arg3: memref<1x64xf32, #tpu.memory_space<vmem>>, %arg4: memref<1x64xf32, #tpu.memory_space<vmem>>, %arg5: memref<64x192xbf16, #tpu.memory_space<vmem>>, %arg6: memref<1x192xbf16, #tpu.memory_space<vmem>>, %arg7: memref<8x192xbf16, #tpu.memory_space<vmem>>, %arg8: memref<8x64xbf16, #tpu.memory_space<vmem>>) attributes {dimension_semantics = [#tpu.dimension_semantics<parallel>, #tpu.dimension_semantics<arbitrary>], iteration_bounds = array<i64: 1, 1>, scalar_prefetch = 0 : i64, scratch_operands = 1 : i64, tpu.core_type = #tpu.core_type<tc>, window_params = [{transform_indices = @transform_0, window_bounds = array<i64: 8, 64>}, {pipeline_mode = #tpu.pipeline_mode<synchronous>, transform_indices = @transform_1, window_bounds = array<i64: 1, 64>}, {pipeline_mode = #tpu.pipeline_mode<synchronous>, transform_indices = @transform_2, window_bounds = array<i64: 1, 64>}, {transform_indices = @transform_3, window_bounds = array<i64: 64, 192>}, {transform_indices = @transform_4, window_bounds = array<i64: 1, 192>}, {transform_indices = @transform_5, window_bounds = array<i64: 8, 192>}]} {
    %c0_i32 = arith.constant 0 : i32
    %0 = arith.cmpi eq, %arg1, %c0_i32 : i32
    %1 = arith.extui %0 : i1 to i32
    %c0_i32_0 = arith.constant 0 : i32
    %2 = arith.cmpi ne, %1, %c0_i32_0 : i32
    scf.if %2 {
      %c0_8 = arith.constant 0 : index
      %c0_9 = arith.constant 0 : index
      %12 = vector.load %arg2[%c0_8, %c0_9] : memref<8x64xbf16, #tpu.memory_space<vmem>>, vector<8x64xbf16>
      %13 = arith.extf %12 : vector<8x64xbf16> to vector<8x64xf32>
      %cst_10 = arith.constant dense<0.000000e+00> : vector<8xf32>
      %14 = vector.multi_reduction <add>, %13, %cst_10 [1] : vector<8x64xf32> to vector<8xf32>
      %15 = vector.shape_cast %14 : vector<8xf32> to vector<8x1xf32>
      %cst_11 = arith.constant 6.400000e+01 : f32
      %16 = vector.broadcast %cst_11 : f32 to vector<8x1xf32>
      %17 = arith.divf %15, %16 : vector<8x1xf32>
      %18 = vector.broadcast %17 : vector<8x1xf32> to vector<8x64xf32>
      %19 = arith.subf %13, %18 : vector<8x64xf32>
      %20 = arith.mulf %19, %19 : vector<8x64xf32>
      %cst_12 = arith.constant dense<0.000000e+00> : vector<8xf32>
      %21 = vector.multi_reduction <add>, %20, %cst_12 [1] : vector<8x64xf32> to vector<8xf32>
      %22 = vector.shape_cast %21 : vector<8xf32> to vector<8x1xf32>
      %cst_13 = arith.constant 6.400000e+01 : f32
      %23 = vector.broadcast %cst_13 : f32 to vector<8x1xf32>
      %24 = arith.divf %22, %23 : vector<8x1xf32>
      %25 = vector.broadcast %17 : vector<8x1xf32> to vector<8x64xf32>
      %26 = arith.subf %13, %25 : vector<8x64xf32>
      %cst_14 = arith.constant 9.99999974E-6 : f32
      %27 = vector.broadcast %cst_14 : f32 to vector<8x1xf32>
      %28 = arith.addf %24, %27 : vector<8x1xf32>
      %29 = math.rsqrt %28 : vector<8x1xf32>
      %30 = vector.broadcast %29 : vector<8x1xf32> to vector<8x64xf32>
      %31 = arith.mulf %26, %30 : vector<8x64xf32>
      %c0_15 = arith.constant 0 : index
      %c0_16 = arith.constant 0 : index
      %32 = vector.load %arg3[%c0_15, %c0_16] : memref<1x64xf32, #tpu.memory_space<vmem>>, vector<1x64xf32>
      %33 = vector.broadcast %32 : vector<1x64xf32> to vector<8x64xf32>
      %34 = arith.mulf %31, %33 : vector<8x64xf32>
      %c0_17 = arith.constant 0 : index
      %c0_18 = arith.constant 0 : index
      %35 = vector.load %arg4[%c0_17, %c0_18] : memref<1x64xf32, #tpu.memory_space<vmem>>, vector<1x64xf32>
      %36 = vector.broadcast %35 : vector<1x64xf32> to vector<8x64xf32>
      %37 = arith.addf %34, %36 : vector<8x64xf32>
      %38 = arith.truncf %37 : vector<8x64xf32> to vector<8x64xbf16>
      %c0_19 = arith.constant 0 : index
      %c0_20 = arith.constant 0 : index
      %39 = vector.load %arg8[%c0_19, %c0_20] : memref<8x64xbf16, #tpu.memory_space<vmem>>, vector<8x64xbf16>
      tpu.vector_store %arg8[%c0_19, %c0_20], %38 {strides = array<i32>} : memref<8x64xbf16, #tpu.memory_space<vmem>>, vector<8x64xbf16>,
    } else {
    }
    %c0 = arith.constant 0 : index
    %c0_1 = arith.constant 0 : index
    %3 = vector.load %arg8[%c0, %c0_1] : memref<8x64xbf16, #tpu.memory_space<vmem>>, vector<8x64xbf16>
    %c0_2 = arith.constant 0 : index
    %c0_3 = arith.constant 0 : index
    %4 = vector.load %arg5[%c0_2, %c0_3] : memref<64x192xbf16, #tpu.memory_space<vmem>>, vector<64x192xbf16>
    %cst = arith.constant dense<0.000000e+00> : vector<8x192xf32>
    %5 = tpu.matmul %3, %4, %cst {dimension_numbers = #tpu.dot_dimension_numbers<[1], [0], [0], [1], [0, 0, 1, 1], [], []>} : vector<8x64xbf16>, vector<64x192xbf16>, vector<8x192xf32> -> vector<8x192xf32>
    %c0_4 = arith.constant 0 : index
    %c0_5 = arith.constant 0 : index
    %6 = vector.load %arg6[%c0_4, %c0_5] : memref<1x192xbf16, #tpu.memory_space<vmem>>, vector<1x192xbf16>
    %7 = arith.extf %6 : vector<1x192xbf16> to vector<1x192xf32>
    %8 = vector.broadcast %7 : vector<1x192xf32> to vector<8x192xf32>
    %9 = arith.addf %5, %8 : vector<8x192xf32>
    %10 = arith.truncf %9 : vector<8x192xf32> to vector<8x192xbf16>
    %c0_6 = arith.constant 0 : index
    %c0_7 = arith.constant 0 : index
    %11 = vector.load %arg7[%c0_6, %c0_7] : memref<8x192xbf16, #tpu.memory_space<vmem>>, vector<8x192xbf16>
    tpu.vector_store %arg7[%c0_6, %c0_7], %10 {strides = array<i32>} : memref<8x192xbf16, #tpu.memory_space<vmem>>, vector<8x192xbf16>,
    return
  }
  func.func @transform_0(%arg0: i32, %arg1: i32) -> (i32, i32) {
    %c0_i32 = arith.constant 0 : i32
    %c0_i32_0 = arith.constant 0 : i32
    return %arg0, %c0_i32 : i32, i32
  }
  func.func @transform_1(%arg0: i32, %arg1: i32) -> (i32, i32) {
    %c0_i32 = arith.constant 0 : i32
    %c0_i32_0 = arith.constant 0 : i32
    %c0_i32_1 = arith.constant 0 : i32
    return %c0_i32, %c0_i32_0 : i32, i32
  }
  func.func @transform_2(%arg0: i32, %arg1: i32) -> (i32, i32) {
    %c0_i32 = arith.constant 0 : i32
    %c0_i32_0 = arith.constant 0 : i32
    %c0_i32_1 = arith.constant 0 : i32
    return %c0_i32, %c0_i32_0 : i32, i32
  }
  func.func @transform_3(%arg0: i32, %arg1: i32) -> (i32, i32) {
    %c0_i32 = arith.constant 0 : i32
    %c0_i32_0 = arith.constant 0 : i32
    return %c0_i32, %arg1 : i32, i32
  }
  func.func @transform_4(%arg0: i32, %arg1: i32) -> (i32, i32) {
    %c0_i32 = arith.constant 0 : i32
    %c0_i32_0 = arith.constant 0 : i32
    return %c0_i32, %arg1 : i32, i32
  }
  func.func @transform_5(%arg0: i32, %arg1: i32) -> (i32, i32) {
    %c0_i32 = arith.constant 0 : i32
    return %arg0, %arg1 : i32, i32
  }
}

</mosaic_0001>

<llo_original>
// kernel: tpu_custom_call.1
$region0: #{tpu_custom_call.1}
  #allocation0 [shape = 'u32[]', space=smem, size = 0x4, offset = 0x4, fixed_abs, tag = 'smem constant byte address 0x4 - core index']
  #allocation1 [shape = 'u32[144,128]{1,0:T(1,128)}', space=vmem, size = 0x12000, scoped, tag = 'internal scratch']
  #allocation2 [shape = 'bf16[8,64]{1,0:T(8,128)(2,1)}', space=vmem, size = 0x800, scoped, tag = 'scratch operand']
  %s0 = inlined_call_operand.hbm [shape: bf16[8,64], index: 0, kind: input, shape index: {}]
  %s1 = inlined_call_operand.hbm [shape: f32[1,64], index: 1, kind: input, shape index: {}]
  %s2 = inlined_call_operand.hbm [shape: f32[1,64], index: 2, kind: input, shape index: {}]
  %s3 = inlined_call_operand.hbm [shape: bf16[64,192], index: 3, kind: input, shape index: {}]
  %s4 = inlined_call_operand.hbm [shape: bf16[1,192], index: 4, kind: input, shape index: {}]
  %s5 = inlined_call_operand.hbm [shape: bf16[8,192], index: 5, kind: output, shape index: {}]
  %s6 = sld [smem:[#allocation0]]
  $region54: #{tpu_custom_call.1} parent=0
    _
  %s8 = ssub.s32 1, %s6
  %s9 = scalar_select 0, %s8, %s6
  $region1: #{tpu_custom_call.1} parent=0
    #allocation3 [shape = 'u8[2048]{0}', space=vmem, size = 0x800, scoped, tag = 'input window, operand 0, single buffered']
    #allocation4 [shape = 's32[1]{0}', space=sflag, size = 0x4, scoped, tag = 'scoped memory for tpu_custom_call.1']
    #allocation5 [shape = 's32[1]{0}', space=sflag, size = 0x4, scoped, tag = 'scoped memory for tpu_custom_call.1']
    #allocation6 [shape = 'u8[512]{0}', space=vmem, size = 0x400, scoped, tag = 'input window, operand 1, single buffered']
    #allocation7 [shape = 's32[1]{0}', space=sflag, size = 0x4, scoped, tag = 'scoped memory for tpu_custom_call.1']
    #allocation8 [shape = 'u8[512]{0}', space=vmem, size = 0x400, scoped, tag = 'input window, operand 2, single buffered']
    #allocation9 [shape = 'u8[32768]{0}', space=vmem, size = 0x8000, scoped, tag = 'input window, operand 3, single buffered']
    #allocation10 [shape = 's32[1]{0}', space=sflag, size = 0x4, scoped, tag = 'scoped memory for tpu_custom_call.1']
    #allocation11 [shape = 'u8[1024]{0}', space=vmem, size = 0x400, scoped, tag = 'input window, operand 4, single buffered']
    #allocation12 [shape = 'u8[4096]{0}', space=vmem, size = 0x1000, scoped, tag = 'output window, operand 0, single buffered']
    %10 = vsyncpa [#allocation4], 0
    %11 = vsyncpa [#allocation7], 0
    %12 = vsyncpa [#allocation10], 0
    %13 = vsyncpa [#allocation5], 0
    // Predicated region
    $region2: #{tpu_custom_call.1} parent=1 // pred_check
      _
    $region3: #{tpu_custom_call.1} parent=1 // pred_check_branch
      %15 = sbr.rel (0) target = $region5
    $region4: #{tpu_custom_call.1} parent=1 // pred_region
      %s17 = ssub.s32 64, 64
      %18 = vsyncadd [#allocation4], %s17
      %s20 = sshll.u32 [#allocation3], 4
      %s21 = int_to_ptr.vmem [resolvable:$true] %s20
      %23 = dma.hbm_to_vmem [thread:$0]  %s0, 64, %s21, [#allocation4]
    $region5: #{tpu_custom_call.1} parent=1 // pred_fallthru
      _
    // Predicated region
    $region6: #{tpu_custom_call.1} parent=1 // pred_check
      _
    $region7: #{tpu_custom_call.1} parent=1 // pred_check_branch
      %25 = sbr.rel (0) target = $region9
    $region8: #{tpu_custom_call.1} parent=1 // pred_region
      %s27 = ssub.s32 16, 16
      %28 = vsyncadd [#allocation7], %s27
      %s30 = sshll.u32 [#allocation6], 4
      %s31 = int_to_ptr.vmem [resolvable:$true] %s30
      %33 = dma.hbm_to_vmem [thread:$0]  %s1, 16, %s31, [#allocation7]
    $region9: #{tpu_custom_call.1} parent=1 // pred_fallthru
      _
    // Predicated region
    $region10: #{tpu_custom_call.1} parent=1 // pred_check
      _
    $region11: #{tpu_custom_call.1} parent=1 // pred_check_branch
      %35 = sbr.rel (0) target = $region13
    $region12: #{tpu_custom_call.1} parent=1 // pred_region
      %s37 = ssub.s32 16, 16
      %38 = vsyncadd [#allocation7], %s37
      %s40 = sshll.u32 [#allocation8], 4
      %s41 = int_to_ptr.vmem [resolvable:$true] %s40
      %43 = dma.hbm_to_vmem [thread:$0]  %s2, 16, %s41, [#allocation7]
    $region13: #{tpu_custom_call.1} parent=1 // pred_fallthru
      _
    // Predicated region
    $region14: #{tpu_custom_call.1} parent=1 // pred_check
      _
    $region15: #{tpu_custom_call.1} parent=1 // pred_check_branch
      %45 = sbr.rel (0) target = $region17
    $region16: #{tpu_custom_call.1} parent=1 // pred_region
      %s47 = ssub.s32 1024, 1024
      %48 = vsyncadd [#allocation10], %s47
      %s49 = sshll.u32 [#allocation9], 4
      %s50 = int_to_ptr.vmem [resolvable:$true] %s49
      %55 = dma.hbm_to_vmem [thread:$0]  %s3, 1024, %s50, [#allocation10], 128, 128, 8
    $region17: #{tpu_custom_call.1} parent=1 // pred_fallthru
      _
    // Predicated region
    $region18: #{tpu_custom_call.1} parent=1 // pred_check
      _
    $region19: #{tpu_custom_call.1} parent=1 // pred_check_branch
      %57 = sbr.rel (0) target = $region21
    $region20: #{tpu_custom_call.1} parent=1 // pred_region
      %s59 = ssub.s32 32, 32
      %60 = vsyncadd [#allocation10], %s59
      %s62 = sshll.u32 [#allocation11], 4
      %s63 = int_to_ptr.vmem [resolvable:$true] %s62
      %65 = dma.hbm_to_vmem [thread:$0]  %s4, 32, %s63, [#allocation10]
    $region21: #{tpu_custom_call.1} parent=1 // pred_fallthru
      _
    // Predicated region
    $region22: #{tpu_custom_call.1} parent=1 // pred_check
      _
    $region23: #{tpu_custom_call.1} parent=1 // pred_check_branch
      %67 = sbr.rel (0) target = $region25
    $region24: #{tpu_custom_call.1} parent=1 // pred_region
      %68 = dma.done [#allocation4], 64
    $region25: #{tpu_custom_call.1} parent=1 // pred_fallthru
      _
    // Predicated region
    $region26: #{tpu_custom_call.1} parent=1 // pred_check
      _
    $region27: #{tpu_custom_call.1} parent=1 // pred_check_branch
      %70 = sbr.rel (0) target = $region29
    $region28: #{tpu_custom_call.1} parent=1 // pred_region
      %71 = dma.done [#allocation7], 16
    $region29: #{tpu_custom_call.1} parent=1 // pred_fallthru
      _
    // Predicated region
    $region30: #{tpu_custom_call.1} parent=1 // pred_check
      _
    $region31: #{tpu_custom_call.1} parent=1 // pred_check_branch
      %73 = sbr.rel (0) target = $region33
    $region32: #{tpu_custom_call.1} parent=1 // pred_region
      %74 = dma.done [#allocation7], 16
    $region33: #{tpu_custom_call.1} parent=1 // pred_fallthru
      _
    // Predicated region
    $region34: #{tpu_custom_call.1} parent=1 // pred_check
      _
    $region35: #{tpu_custom_call.1} parent=1 // pred_check_branch
      %76 = sbr.rel (0) target = $region37
    $region36: #{tpu_custom_call.1} parent=1 // pred_region
      %77 = dma.done [#allocation10], 1024
    $region37: #{tpu_custom_call.1} parent=1 // pred_fallthru
      _
    // Predicated region
    $region38: #{tpu_custom_call.1} parent=1 // pred_check
      _
    $region39: #{tpu_custom_call.1} parent=1 // pred_check_branch
      %79 = sbr.rel (0) target = $region41
    $region40: #{tpu_custom_call.1} parent=1 // pred_region
      %80 = dma.done [#allocation10], 32
    $region41: #{tpu_custom_call.1} parent=1 // pred_fallthru
      _
    %p82 = scmp.eq.s32.totalorder 0, 0
    // Predicated region
    $region42: #{tpu_custom_call.1} parent=1 // pred_check
      %p83 = pneg %p82
    $region43: #{tpu_custom_call.1} parent=1 // pred_check_branch
      %85 = sbr.rel (%p83) target = $region45
    $region44: #{tpu_custom_call.1} parent=1 // pred_region
      %v86 = vld [vmem:[#allocation3] sm:$0xf]
      %v87 = vunpack.c.l.bf16 %v86
      %vm88 = vcmask 523264
      %v89 = vsel %vm88, %v87, 0.0
      %90 = vadd.xlane.f32.xlu0 %v89
      %v91 = vpop.xlane.xlu0 %90
      %v92 = vrcp.pop 64.0
      %v93 = vmul.f32 %v91, %v92
      %v94 = vsub.f32 %v87, %v93
      %v95 = vmul.f32 %v94, %v94
      %v96 = vsel %vm88, %v95, 0.0
      %97 = vadd.xlane.f32.xlu0 %v96
      %v98 = vpop.xlane.xlu0 %97
      %v99 = vmul.f32 %v98, %v92
      %v100 = vadd.f32 %v99, 1e-05
      %v101 = vrsqrt.pop %v100
      %v102 = vmul.f32 %v94, %v101
      %v103 = vld [vmem:[#allocation6] sm:$0x1]
      %v105 = vlaneseq
      %v106 = vshrl.u32 %v105, 7
      %v107 = vsub.s32 0, %v106
      %v108 = vrot.slane %v103, %v107
      %v110 = vmul.f32 %v102, %v108
      %v111 = vld [vmem:[#allocation8] sm:$0x1]
      %v113 = vlaneseq
      %v114 = vshrl.u32 %v113, 7
      %v115 = vsub.s32 0, %v114
      %v116 = vrot.slane %v111, %v115
      %v118 = vadd.f32 %v110, %v116
      %v119 = vpack.c.bf16 %v118, %v118
      %vm120 = vcmask 519168
      %121 = vst.msk [vmem:[#allocation2] sm:$0xf] %vm120, %v119
    $region45: #{tpu_custom_call.1} parent=1 // pred_fallthru
      _
    %v122 = vld [vmem:[#allocation2] sm:$0xf]
    %v123 = vld [vmem:[#allocation9] sm:$0xff]
    %v124 = vld [vmem:[#allocation9 + $0x8] sm:$0xff]
    %v125 = vld [vmem:[#allocation9 + $0x10] sm:$0xff]
    %v126 = vld [vmem:[#allocation9 + $0x18] sm:$0xff]
    %v127 = vld [vmem:[#allocation9 + $0x20] sm:$0xff]
    %v128 = vld [vmem:[#allocation9 + $0x28] sm:$0xff]
    %v129 = vld [vmem:[#allocation9 + $0x30] sm:$0xff]
    %v130 = vld [vmem:[#allocation9 + $0x38] sm:$0xff]
    %v131 = vld [vmem:[#allocation11] sm:$0x3]
    %v132 = vunpack.c.l.bf16 %v131
    %v134 = vlaneseq
    %v135 = vshrl.u32 %v134, 7
    %v136 = vsub.s32 0, %v135
    %v137 = vrot.slane %v132, %v136
    %v138 = vlaneseq
    %v139 = vshrl.u32 %v138, 7
    %v140 = vsub.s32 2, %v139
    %v141 = vrot.slane %v132, %v140
    %v144 = vlaneseq
    %v145 = vshrl.u32 %v144, 7
    %v146 = vsub.s32 0, %v145
    %v147 = vrot.slane %v137, %v146
    %v148 = vlaneseq
    %v149 = vshrl.u32 %v148, 7
    %v150 = vsub.s32 0, %v149
    %v151 = vrot.slane %v141, %v150
    %v160 = vunpack.c.l.b16 %v123
    %v161 = vunpack.c.h.b16 %v123
    %v162 = vunpack.c.l.b16 %v124
    %v163 = vunpack.c.h.b16 %v124
    %v164 = vunpack.c.l.b16 %v125
    %v165 = vunpack.c.h.b16 %v125
    %v166 = vunpack.c.l.b16 %v126
    %v167 = vunpack.c.h.b16 %v126
    %v168 = vunpack.c.l.b16 %v127
    %v169 = vunpack.c.h.b16 %v127
    %v170 = vunpack.c.l.b16 %v128
    %v171 = vunpack.c.h.b16 %v128
    %v172 = vunpack.c.l.b16 %v129
    %v173 = vunpack.c.h.b16 %v129
    %v174 = vunpack.c.l.b16 %v130
    %v175 = vunpack.c.h.b16 %v130
    %v176 = vpack.c.b16 %v162, %v160
    %v177 = vpack.c.b16 %v163, %v161
    %v178 = vpack.c.b16 %v166, %v164
    %v179 = vpack.c.b16 %v167, %v165
    %v180 = vpack.c.b16 %v170, %v168
    %v181 = vpack.c.b16 %v171, %v169
    %v182 = vpack.c.b16 %v174, %v172
    %v183 = vpack.c.b16 %v175, %v173
    %vm192 = vcmask 523264
    %v194 = vsel %vm192, %v122, 0
    %196 = vmatprep.subr.bf16.mxu0 %v177
    %197 = vmatpush1.bf16.msra.mxu0 %v176
    %198 = vmatprep.subr.bf16.mxu0 %v179
    %199 = vmatpush1.bf16.msra.mxu0 %v178
    %200 = vmatprep.subr.bf16.mxu0 %v181
    %201 = vmatpush1.bf16.msra.mxu0 %v180
    %202 = vmatprep.subr.bf16.mxu0 %v183
    %203 = vmatpush1.bf16.msra.mxu0 %v182
    %204 = vmatprep.subr.bf16.mxu0 0
    %205 = vmatpush1.bf16.msra.mxu0 0
    %206 = vmatprep.subr.bf16.mxu0 0
    %207 = vmatpush1.bf16.msra.mxu0 0
    %208 = vmatprep.subr.bf16.mxu0 0
    %209 = vmatpush1.bf16.msra.mxu0 0
    %210 = vmatprep.subr.bf16.mxu0 0
    %211 = vmatpush1.bf16.msra.mxu0 0
    %212 = vmatprep.subr.bf16.mxu0 0
    %213 = vmatpush1.bf16.msra.mxu0 0
    %214 = vmatprep.subr.bf16.mxu0 0
    %215 = vmatpush1.bf16.msra.mxu0 0
    %216 = vmatprep.subr.bf16.mxu0 0
    %217 = vmatpush1.bf16.msra.mxu0 0
    %218 = vmatprep.subr.bf16.mxu0 0
    %219 = vmatpush1.bf16.msra.mxu0 0
    %220 = vmatprep.subr.bf16.mxu0 0
    %221 = vmatpush1.bf16.msra.mxu0 0
    %222 = vmatprep.subr.bf16.mxu0 0
    %223 = vmatpush1.bf16.msra.mxu0 0
    %224 = vmatprep.subr.bf16.mxu0 0
    %225 = vmatpush1.bf16.msra.mxu0 0
    %226 = vmatprep.subr.bf16.mxu0 0
    %227 = vmatpush1.bf16.msra.mxu0 0
    %228 = vmatprep.mubr.bf16.mxu0 0
    %229 = vmatmul.mubr.bf16.gmra.mrb[0].mxu0 %v194
    %v230 = vpop.f32.mrb[0].mxu0
    %v231 = vadd.f32 %v147, %v230
    %v232 = vpop.f32.mrb[0].mxu0
    %v233 = vadd.f32 %v151, %v232
    %v234 = vpop.f32.mrb[0].mxu0
    %v235 = vpop.f32.mrb[0].mxu0
    %236 = vdwg.mxu0
    %v237 = vpack.c.bf16 %v231, %v231
    %v238 = vpack.c.bf16 %v233, %v233
    %v241 = vunpack.c.l.b16 %v237
    %v242 = vunpack.c.l.b16 %v238
    %v243 = vpack.c.b16 %v242, %v241
    %vm245 = vcmask 1043456
    %vm246 = vcmask 523268
    %vm247 = vmor %vm246, %vm245
    %248 = vst.msk [vmem:[#allocation12] sm:$0xff] %vm247, %v243
    // Predicated region
    $region46: #{tpu_custom_call.1} parent=1 // pred_check
      _
    $region47: #{tpu_custom_call.1} parent=1 // pred_check_branch
      %250 = sbr.rel (0) target = $region49
    $region48: #{tpu_custom_call.1} parent=1 // pred_region
      %s252 = ssub.s32 128, 128
      %253 = vsyncadd [#allocation5], %s252
      %s255 = sshll.u32 [#allocation12], 4
      %s256 = int_to_ptr.vmem [resolvable:$true] %s255
      %258 = dma.vmem_to_hbm [thread:$0]  %s256, 128, %s5, [#allocation5]
    $region49: #{tpu_custom_call.1} parent=1 // pred_fallthru
      _
    // Predicated region
    $region50: #{tpu_custom_call.1} parent=1 // pred_check
      _
    $region51: #{tpu_custom_call.1} parent=1 // pred_check_branch
      %260 = sbr.rel (0) target = $region53
    $region52: #{tpu_custom_call.1} parent=1 // pred_region
      %261 = dma.done [#allocation5], 128
    $region53: #{tpu_custom_call.1} parent=1 // pred_fallthru
      _
    %262 = vsyncpa [#allocation4], 1
    %263 = vsyncpa [#allocation7], 1
    %264 = vsyncpa [#allocation10], 1
    %265 = vsyncpa [#allocation5], 1

</llo_original>
